<compile_context>
chip_gen: v7x
topology: tpu7x:2x2x1
jax: 0.10.0
libtpu: 0.0.40
codegen_flags: <defaults>
</compile_context>

<pallas_src>
import functools

import jax
import jax.numpy as jnp
from jax.experimental import pallas as pl
from jax.experimental.pallas import tpu as pltpu


def _round_up(x, m):
    return (x + m - 1) // m * m


def _cdiv(a, b):
    return -(-a // b)


def _vmem_physical_bytes():
    """Best-effort physical VMEM size query (falls back to 128 MiB)."""
    try:
        info = pltpu.get_tpu_info()
        for attr in ("vmem_capacity_bytes", "vmem_size_bytes", "vmem_bytes"):
            v = getattr(info, attr, None)
            if v:
                return int(v)
    except Exception:
        pass
    return 128 << 20


def _const_spec(shape, single_buffer):
    """BlockSpec for a grid-invariant operand (single-buffered when large)."""
    index_map = lambda b, h: (0,) * len(shape)
    if single_buffer and hasattr(pl, "Buffered"):
        try:
            return pl.BlockSpec(shape, index_map, pipeline_mode=pl.Buffered(1))
        except TypeError:       # older BlockSpec without pipeline_mode kwarg
            pass
    return pl.BlockSpec(shape, index_map)


def _global_branch_kernel(x_ref, w1_ref, b1_ref, w2_ref, b2_ref,
                          feat_ref, logits_ref, pool_acc,
                          *, use_max_pool, inv_hw, hw_total, tile_hw,
                          need_hw_mask):
    hw = pl.program_id(1)

    # Initialize the pooled accumulator on the first HW tile of this B tile.
    @pl.when(hw == 0)
    def _init():
        if use_max_pool:
            pool_acc[...] = jnp.full_like(pool_acc, -jnp.inf)
        else:
            pool_acc[...] = jnp.zeros_like(pool_acc)

    # x tile: (tile_b, C, tile_hw) -- native NCHW slab, HW on the lane axis.
    x = x_ref[...].astype(jnp.float32)
    if need_hw_mask:
        # Ragged last HW tile: mask lanes beyond the true spatial extent.
        lane = jax.lax.broadcasted_iota(jnp.int32, x.shape, 2)
        valid = (hw * tile_hw + lane) < hw_total
        fill = jnp.float32(-jnp.inf) if use_max_pool else jnp.float32(0.0)
        x = jnp.where(valid, x, fill)

    # Lane-axis (XLU) reduction: effectively free under the DMA-bound loop.
    if use_max_pool:
        pool_acc[...] = jnp.maximum(pool_acc[...], jnp.max(x, axis=2))
    else:
        pool_acc[...] = pool_acc[...] + jnp.sum(x, axis=2)

    # Finalize: fc (eval-BN folded into w1/b1) + ReLU + classifier.
    @pl.when(hw == pl.num_programs(1) - 1)
    def _finalize():
        pooled = pool_acc[...]
        if not use_max_pool:
            pooled = pooled * inv_hw                       # mean = sum * 1/HW
        # bf16 MXU inputs, f32 accumulation (intentional inference precision).
        h = jnp.dot(pooled.astype(jnp.bfloat16), w1_ref[...],
                    preferred_element_type=jnp.float32) + b1_ref[...]
        h = jnp.maximum(h, 0.0)                            # ReLU (f32, VPU)
        feat_ref[...] = h.astype(feat_ref.dtype)
        logits = jnp.dot(h.astype(jnp.bfloat16), w2_ref[...],
                         preferred_element_type=jnp.float32) + b2_ref[...]
        logits_ref[...] = logits.astype(logits_ref.dtype)


def global_branch_forward(x_nchw, params, *, use_max_pool=False, eps=1e-5,
                          tile_b=None, tile_hw=None):
    """Returns (predict, xent, triplet, {}, features_map) like GlobalBranch.forward."""
    B, C, H, W = x_nchw.shape
    HW = H * W
    D = params["fc_w"].shape[0]       # global_dim
    K = params["cls_w"].shape[0]      # num_classes
    x_elt = jnp.dtype(x_nchw.dtype).itemsize

    # ---- fold eval-mode BatchNorm1d into the fc Linear (wrapper-side) ------
    scale = params["bn_gamma"] * jax.lax.rsqrt(params["bn_var"] + eps)   # (D,)
    w1 = params["fc_w"].T * scale[None, :]                               # (C, D)
    b1 = (params["fc_b"] - params["bn_mean"]) * scale + params["bn_beta"]
    w2 = params["cls_w"].T                                               # (D, K)
    b2 = params["cls_b"]

    # ---- generation-aware VMEM budgets --------------------------------------
    phys_vmem = _vmem_physical_bytes()
    small_vmem = phys_vmem <= (64 << 20)                    # v7x-class part
    vmem_cap = (48 << 20) if small_vmem else (96 << 20)
    x_buf_budget = (4 << 20) if small_vmem else (6 << 20)   # per x input buffer

    # ---- lane-dense weight / output dims -------------------------------------
    D_pad = _round_up(D, 128)
    K_pad = _round_up(K, 128)

    # ---- tile sizing ----------------------------------------------------------
    b_ceil = _round_up(B, 8)
    if tile_b is None:
        tile_b = min(b_ceil, 128)          # feed the MXU with up to 128 LHS rows
        # keep >=2 b-tiles when the batch allows so the "parallel" grid axis can
        # shard across v7x's two TensorCores (harmless on 1-TC v5e/v6e).
        if b_ceil >= 16:
            tile_b = min(tile_b, _round_up(_cdiv(B, 2), 8))
    tile_b = min(_round_up(max(1, tile_b), 8), b_ceil)

    min_hw = HW if HW < 128 else 128
    if tile_hw is None:
        # shrink tile_b first if even a minimal HW slab would blow the budget
        max_b = max(8, (x_buf_budget // max(1, C * min_hw * x_elt)) // 8 * 8)
        tile_b = min(tile_b, max_b)
        t = x_buf_budget // max(1, tile_b * C * x_elt)
        tile_hw = max(min_hw, (t // 128) * 128)
    # legality: last block dim must be a multiple of 128 or the full extent.
    if tile_hw >= HW:
        tile_hw = HW
    else:
        tile_hw = max(128, _round_up(tile_hw, 128))
        if tile_hw >= HW:
            tile_hw = HW

    num_b = _cdiv(B, tile_b)
    num_hw = _cdiv(HW, tile_hw)
    need_hw_mask = (HW % tile_hw) != 0
    B_out = num_b * tile_b

    # ---- operands -------------------------------------------------------------
    # x stays in native NCHW layout: reshaping to (B, C, HW) is a free bitcast,
    # so the kernel reads x exactly once from HBM (no transpose / pad copies).
    # bf16 activations are passed through unchanged (kernel upcasts per tile).
    x3 = x_nchw.reshape(B, C, HW)

    w1p = jnp.pad(w1, ((0, 0), (0, D_pad - D))).astype(jnp.bfloat16)
    b1p = jnp.pad(b1, (0, D_pad - D)).reshape(1, D_pad).astype(jnp.float32)
    w2p = jnp.pad(w2, ((0, D_pad - D), (0, K_pad - K))).astype(jnp.bfloat16)
    b2p = jnp.pad(b2, (0, K_pad - K)).reshape(1, K_pad).astype(jnp.float32)

    const_bytes = (w1p.size + w2p.size) * 2 + (b1p.size + b2p.size) * 4
    # Single-buffering constants only pays off when they occupy real VMEM.
    single_buffer_consts = const_bytes > (2 << 20)

    # ---- VMEM accounting & advisory cost --------------------------------------
    x_buf = tile_b * C * tile_hw * x_elt
    out_buf = tile_b * (D_pad + K_pad) * 4
    scratch_buf = tile_b * max(C, 128) * 4
    const_mult = 1 if single_buffer_consts else 2
    vmem_need = 2 * x_buf + const_mult * const_bytes + 2 * out_buf + scratch_buf
    vmem_limit = int(min(vmem_cap, max(16 << 20, int(1.5 * vmem_need))))

    cost = pl.CostEstimate(
        flops=int(B * C * HW
                  + 2 * B_out * C * D_pad
                  + 2 * B_out * D_pad * K_pad),
        transcendentals=0,
        bytes_accessed=int(B * C * HW * x_elt
                           + (w1p.size + w2p.size) * 2
                           + (b1p.size + b2p.size) * 4
                           + B_out * (D_pad + K_pad) * 4),
    )

    kernel = functools.partial(
        _global_branch_kernel,
        use_max_pool=use_max_pool,
        inv_hw=1.0 / float(HW),
        hw_total=HW,
        tile_hw=tile_hw,
        need_hw_mask=need_hw_mask,
    )

    feat_p, logits_p = pl.pallas_call(
        kernel,
        grid=(num_b, num_hw),
        in_specs=[
            pl.BlockSpec((tile_b, C, tile_hw), lambda b, h: (b, 0, h)),
            _const_spec((C, D_pad), single_buffer_consts),
            _const_spec((1, D_pad), single_buffer_consts),
            _const_spec((D_pad, K_pad), single_buffer_consts),
            _const_spec((1, K_pad), single_buffer_consts),
        ],
        out_specs=[
            pl.BlockSpec((tile_b, D_pad), lambda b, h: (b, 0)),
            pl.BlockSpec((tile_b, K_pad), lambda b, h: (b, 0)),
        ],
        out_shape=[
            jax.ShapeDtypeStruct((B_out, D_pad), jnp.float32),
            jax.ShapeDtypeStruct((B_out, K_pad), jnp.float32),
        ],
        scratch_shapes=[pltpu.VMEM((tile_b, C), jnp.float32)],
        compiler_params=pltpu.CompilerParams(
            dimension_semantics=("parallel", "arbitrary"),
            vmem_limit_bytes=vmem_limit),
        cost_estimate=cost,
    )(x3, w1p, b1p, w2p, b2p)

    feat = feat_p[:B, :D]
    logits = logits_p[:B, :K]

    predict = [feat]
    triplet = [feat]
    xent = [logits]
    features_map = x_nchw
    return predict, xent, triplet, {}, features_map


def init_global_branch_params(key, input_dim, output_dim, num_classes):
    """Deterministic synthetic init (mirrors the module's layer shapes)."""
    k1, k2, k3, k4 = jax.random.split(key, 4)
    params = {
        # fc: Linear(input_dim, output_dim)
        "fc_w": jax.random.normal(k1, (output_dim, input_dim), jnp.float32) * 0.05,
        "fc_b": jax.random.normal(k2, (output_dim,), jnp.float32) * 0.01,
        # BatchNorm1d(output_dim) fresh-init running stats
        "bn_gamma": jnp.ones((output_dim,), jnp.float32),
        "bn_beta": jnp.zeros((output_dim,), jnp.float32),
        "bn_mean": jnp.zeros((output_dim,), jnp.float32),
        "bn_var": jnp.ones((output_dim,), jnp.float32),
        # classifier: Linear(output_dim, num_classes)
        "cls_w": jax.random.normal(k3, (num_classes, output_dim), jnp.float32) * 0.05,
        "cls_b": jax.random.normal(k4, (num_classes,), jnp.float32) * 0.01,
    }
    return params


def _reference(x_nchw, params, use_max_pool, eps):
    """Pure-JAX eval-mode reference matching the PyTorch module."""
    B, C, H, W = x_nchw.shape
    x = x_nchw.reshape(B, C, H * W)
    pooled = jnp.max(x, -1) if use_max_pool else jnp.mean(x, -1)
    h = pooled @ params["fc_w"].T + params["fc_b"]
    inv_std = jax.lax.rsqrt(params["bn_var"] + eps)
    h = (h - params["bn_mean"]) * inv_std * params["bn_gamma"] + params["bn_beta"]
    h = jnp.maximum(h, 0.0)
    logits = h @ params["cls_w"].T + params["cls_b"]
    return h, logits


if __name__ == "__main__":
    global_dim = 32                    # args['global_dim']
    num_classes = 10

    key = jax.random.PRNGKey(0)

    # (shape, tile_hw) configs:
    #   None               -> single full-extent HW block (no accumulation loop)
    #   128 with HW=256    -> HW reduction split over grid steps (accumulator)
    #   128 with HW=180    -> ragged last HW tile (in-kernel mask path)
    configs = [
        ((2, 8, 16, 16), None),
        ((2, 8, 16, 16), 128),
        ((2, 8, 10, 18), 128),
    ]

    for (B, C, H, W), tile_hw in configs:
        kx, kp, key = jax.random.split(key, 3)
        x = jax.random.normal(kx, (B, C, H, W), jnp.float32)
        params = init_global_branch_params(kp, C, global_dim, num_classes)

        for use_max in (False, True):
            predict, xent, triplet, extra, fmap = global_branch_forward(
                x, params, use_max_pool=use_max, tile_hw=tile_hw)
            feat = jax.block_until_ready(predict[0])
            logits = jax.block_until_ready(xent[0])
            jax.block_until_ready(fmap)

            assert feat.shape == (B, global_dim)
            assert triplet[0].shape == (B, global_dim)
            assert logits.shape == (B, num_classes)
            assert fmap.shape == (B, C, H, W)
            assert extra == {}

            ref_feat, ref_logits = _reference(x, params, use_max, 1e-5)
            err_f = float(jnp.max(jnp.abs(feat - ref_feat)))
            err_l = float(jnp.max(jnp.abs(logits - ref_logits)))
            assert err_f < 1e-2, (use_max, tile_hw, err_f)
            assert err_l < 1e-2, (use_max, tile_hw, err_l)

    print("KERNEL_OK")
</pallas_src>

<mosaic_0001>
module attributes {stable_mosaic.version = 11 : i64} {
  func.func @_global_branch_kernel(%arg0: i32, %arg1: i32, %arg2: memref<8x8x256xf32, #tpu.memory_space<vmem>>, %arg3: memref<8x128xbf16, #tpu.memory_space<vmem>>, %arg4: memref<1x128xf32, #tpu.memory_space<vmem>>, %arg5: memref<128x128xbf16, #tpu.memory_space<vmem>>, %arg6: memref<1x128xf32, #tpu.memory_space<vmem>>, %arg7: memref<8x128xf32, #tpu.memory_space<vmem>>, %arg8: memref<8x128xf32, #tpu.memory_space<vmem>>, %arg9: memref<8x8xf32, #tpu.memory_space<vmem>>) attributes {dimension_semantics = [#tpu.dimension_semantics<parallel>, #tpu.dimension_semantics<arbitrary>], iteration_bounds = array<i64: 1, 1>, scalar_prefetch = 0 : i64, scratch_operands = 1 : i64, tpu.core_type = #tpu.core_type<tc>, window_params = [{transform_indices = @transform_0, window_bounds = array<i64: 8, 8, 256>}, {pipeline_mode = #tpu.pipeline_mode<synchronous>, transform_indices = @transform_1, window_bounds = array<i64: 8, 128>}, {pipeline_mode = #tpu.pipeline_mode<synchronous>, transform_indices = @transform_2, window_bounds = array<i64: 1, 128>}, {pipeline_mode = #tpu.pipeline_mode<synchronous>, transform_indices = @transform_3, window_bounds = array<i64: 128, 128>}, {pipeline_mode = #tpu.pipeline_mode<synchronous>, transform_indices = @transform_4, window_bounds = array<i64: 1, 128>}, {transform_indices = @transform_5, window_bounds = array<i64: 8, 128>}, {transform_indices = @transform_6, window_bounds = array<i64: 8, 128>}]} {
    %c0_i32 = arith.constant 0 : i32
    %0 = arith.cmpi eq, %arg1, %c0_i32 : i32
    %1 = arith.extui %0 : i1 to i32
    %c0_i32_0 = arith.constant 0 : i32
    %2 = arith.cmpi ne, %1, %c0_i32_0 : i32
    scf.if %2 {
      %cst_9 = arith.constant 0.000000e+00 : f32
      %11 = vector.broadcast %cst_9 : f32 to vector<8x8xf32>
      %c0_10 = arith.constant 0 : index
      %c0_11 = arith.constant 0 : index
      %12 = vector.load %arg9[%c0_10, %c0_11] : memref<8x8xf32, #tpu.memory_space<vmem>>, vector<8x8xf32>
      tpu.vector_store %arg9[%c0_10, %c0_11], %11 {strides = array<i32>} : memref<8x8xf32, #tpu.memory_space<vmem>>, vector<8x8xf32>,
    } else {
    }
    %c0 = arith.constant 0 : index
    %c0_1 = arith.constant 0 : index
    %c0_2 = arith.constant 0 : index
    %3 = vector.load %arg2[%c0, %c0_1, %c0_2] : memref<8x8x256xf32, #tpu.memory_space<vmem>>, vector<8x8x256xf32>
    %c0_3 = arith.constant 0 : index
    %c0_4 = arith.constant 0 : index
    %4 = vector.load %arg9[%c0_3, %c0_4] : memref<8x8xf32, #tpu.memory_space<vmem>>, vector<8x8xf32>
    %cst = arith.constant dense<0.000000e+00> : vector<8x8xf32>
    %5 = vector.multi_reduction <add>, %3, %cst [2] : vector<8x8x256xf32> to vector<8x8xf32>
    %6 = arith.addf %4, %5 : vector<8x8xf32>
    %c0_5 = arith.constant 0 : index
    %c0_6 = arith.constant 0 : index
    %7 = vector.load %arg9[%c0_5, %c0_6] : memref<8x8xf32, #tpu.memory_space<vmem>>, vector<8x8xf32>
    tpu.vector_store %arg9[%c0_5, %c0_6], %6 {strides = array<i32>} : memref<8x8xf32, #tpu.memory_space<vmem>>, vector<8x8xf32>,
    %c0_i32_7 = arith.constant 0 : i32
    %8 = arith.cmpi eq, %arg1, %c0_i32_7 : i32
    %9 = arith.extui %8 : i1 to i32
    %c0_i32_8 = arith.constant 0 : i32
    %10 = arith.cmpi ne, %9, %c0_i32_8 : i32
    scf.if %10 {
      %c0_9 = arith.constant 0 : index
      %c0_10 = arith.constant 0 : index
      %11 = vector.load %arg9[%c0_9, %c0_10] : memref<8x8xf32, #tpu.memory_space<vmem>>, vector<8x8xf32>
      %cst_11 = arith.constant 3.906250e-03 : f32
      %12 = vector.broadcast %cst_11 : f32 to vector<8x8xf32>
      %13 = arith.mulf %11, %12 : vector<8x8xf32>
      %14 = arith.truncf %13 : vector<8x8xf32> to vector<8x8xbf16>
      %c0_12 = arith.constant 0 : index
      %c0_13 = arith.constant 0 : index
      %15 = vector.load %arg3[%c0_12, %c0_13] : memref<8x128xbf16, #tpu.memory_space<vmem>>, vector<8x128xbf16>
      %cst_14 = arith.constant dense<0.000000e+00> : vector<8x128xf32>
      %16 = tpu.matmul %14, %15, %cst_14 {dimension_numbers = #tpu.dot_dimension_numbers<[1], [0], [0], [1], [0, 0, 1, 1], [], []>} : vector<8x8xbf16>, vector<8x128xbf16>, vector<8x128xf32> -> vector<8x128xf32>
      %c0_15 = arith.constant 0 : index
      %c0_16 = arith.constant 0 : index
      %17 = vector.load %arg4[%c0_15, %c0_16] : memref<1x128xf32, #tpu.memory_space<vmem>>, vector<1x128xf32>
      %18 = vector.broadcast %17 : vector<1x128xf32> to vector<8x128xf32>
      %19 = arith.addf %16, %18 : vector<8x128xf32>
      %cst_17 = arith.constant 0.000000e+00 : f32
      %20 = vector.broadcast %cst_17 : f32 to vector<8x128xf32>
      %21 = arith.maximumf %19, %20 : vector<8x128xf32>
      %c0_18 = arith.constant 0 : index
      %c0_19 = arith.constant 0 : index
      %22 = vector.load %arg7[%c0_18, %c0_19] : memref<8x128xf32, #tpu.memory_space<vmem>>, vector<8x128xf32>
      tpu.vector_store %arg7[%c0_18, %c0_19], %21 {strides = array<i32>} : memref<8x128xf32, #tpu.memory_space<vmem>>, vector<8x128xf32>,
      %23 = arith.truncf %21 : vector<8x128xf32> to vector<8x128xbf16>
      %c0_20 = arith.constant 0 : index
      %c0_21 = arith.constant 0 : index
      %24 = vector.load %arg5[%c0_20, %c0_21] : memref<128x128xbf16, #tpu.memory_space<vmem>>, vector<128x128xbf16>
      %cst_22 = arith.constant dense<0.000000e+00> : vector<8x128xf32>
      %25 = tpu.matmul %23, %24, %cst_22 {dimension_numbers = #tpu.dot_dimension_numbers<[1], [0], [0], [1], [0, 0, 1, 1], [], []>} : vector<8x128xbf16>, vector<128x128xbf16>, vector<8x128xf32> -> vector<8x128xf32>
      %c0_23 = arith.constant 0 : index
      %c0_24 = arith.constant 0 : index
      %26 = vector.load %arg6[%c0_23, %c0_24] : memref<1x128xf32, #tpu.memory_space<vmem>>, vector<1x128xf32>
      %27 = vector.broadcast %26 : vector<1x128xf32> to vector<8x128xf32>
      %28 = arith.addf %25, %27 : vector<8x128xf32>
      %c0_25 = arith.constant 0 : index
      %c0_26 = arith.constant 0 : index
      %29 = vector.load %arg8[%c0_25, %c0_26] : memref<8x128xf32, #tpu.memory_space<vmem>>, vector<8x128xf32>
      tpu.vector_store %arg8[%c0_25, %c0_26], %28 {strides = array<i32>} : memref<8x128xf32, #tpu.memory_space<vmem>>, vector<8x128xf32>,
    } else {
    }
    return
  }
  func.func @transform_0(%arg0: i32, %arg1: i32) -> (i32, i32, i32) {
    %c0_i32 = arith.constant 0 : i32
    %c0_i32_0 = arith.constant 0 : i32
    return %arg0, %c0_i32, %arg1 : i32, i32, i32
  }
  func.func @transform_1(%arg0: i32, %arg1: i32) -> (i32, i32) {
    %c0_i32 = arith.constant 0 : i32
    %c0_i32_0 = arith.constant 0 : i32
    %c0_i32_1 = arith.constant 0 : i32
    return %c0_i32, %c0_i32_0 : i32, i32
  }
  func.func @transform_2(%arg0: i32, %arg1: i32) -> (i32, i32) {
    %c0_i32 = arith.constant 0 : i32
    %c0_i32_0 = arith.constant 0 : i32
    %c0_i32_1 = arith.constant 0 : i32
    return %c0_i32, %c0_i32_0 : i32, i32
  }
  func.func @transform_3(%arg0: i32, %arg1: i32) -> (i32, i32) {
    %c0_i32 = arith.constant 0 : i32
    %c0_i32_0 = arith.constant 0 : i32
    %c0_i32_1 = arith.constant 0 : i32
    return %c0_i32, %c0_i32_0 : i32, i32
  }
  func.func @transform_4(%arg0: i32, %arg1: i32) -> (i32, i32) {
    %c0_i32 = arith.constant 0 : i32
    %c0_i32_0 = arith.constant 0 : i32
    %c0_i32_1 = arith.constant 0 : i32
    return %c0_i32, %c0_i32_0 : i32, i32
  }
  func.func @transform_5(%arg0: i32, %arg1: i32) -> (i32, i32) {
    %c0_i32 = arith.constant 0 : i32
    %c0_i32_0 = arith.constant 0 : i32
    return %arg0, %c0_i32 : i32, i32
  }
  func.func @transform_6(%arg0: i32, %arg1: i32) -> (i32, i32) {
    %c0_i32 = arith.constant 0 : i32
    %c0_i32_0 = arith.constant 0 : i32
    return %arg0, %c0_i32 : i32, i32
  }
}

</mosaic_0001>

<llo_original>
// kernel: tpu_custom_call.1
$region0: #{tpu_custom_call.1}
  #allocation0 [shape = 'u32[]', space=smem, size = 0x4, offset = 0x4, fixed_abs, tag = 'smem constant byte address 0x4 - core index']
  #allocation1 [shape = 'u32[144,128]{1,0:T(1,128)}', space=vmem, size = 0x12000, scoped, tag = 'internal scratch']
  #allocation2 [shape = 'f32[8,8]{1,0:T(8,128)}', space=vmem, size = 0x1000, scoped, tag = 'scratch operand']
  %s0 = inlined_call_operand.hbm [shape: f32[2,8,256], index: 0, kind: input, shape index: {}]
  %s1 = inlined_call_operand.hbm [shape: bf16[8,128], index: 1, kind: input, shape index: {}]
  %s2 = inlined_call_operand.vmem [shape: f32[1,128], index: 2, kind: input, shape index: {}]
  %s3 = inlined_call_operand.hbm [shape: bf16[128,128], index: 3, kind: input, shape index: {}]
  %s4 = inlined_call_operand.vmem [shape: f32[1,128], index: 4, kind: input, shape index: {}]
  %s5 = inlined_call_operand.hbm [shape: f32[8,128], index: 5, kind: output, shape index: {0}]
  %s6 = inlined_call_operand.hbm [shape: f32[8,128], index: 6, kind: output, shape index: {1}]
  %7 = xla_tuple %s5, %s6
  %s8 = sld [smem:[#allocation0]]
  $region58: #{tpu_custom_call.1} parent=0
    _
  %s10 = ssub.s32 1, %s8
  %s11 = scalar_select 0, %s10, %s8
  $region1: #{tpu_custom_call.1} parent=0
    #allocation3 [shape = 'u8[65536]{0}', space=vmem, size = 0x10000, scoped, tag = 'input window, operand 0, single buffered']
    #allocation4 [shape = 's32[1]{0}', space=sflag, size = 0x4, scoped, tag = 'scoped memory for tpu_custom_call.1']
    #allocation5 [shape = 's32[1]{0}', space=sflag, size = 0x4, scoped, tag = 'scoped memory for tpu_custom_call.1']
    #allocation6 [shape = 'u8[2048]{0}', space=vmem, size = 0x800, scoped, tag = 'input window, operand 1, single buffered']
    #allocation7 [shape = 's32[1]{0}', space=sflag, size = 0x4, scoped, tag = 'scoped memory for tpu_custom_call.1']
    #allocation8 [shape = 'u8[32768]{0}', space=vmem, size = 0x8000, scoped, tag = 'input window, operand 3, single buffered']
    #allocation9 [shape = 'u8[4096]{0}', space=vmem, size = 0x1000, scoped, tag = 'output window, operand 0, single buffered']
    #allocation10 [shape = 'u8[4096]{0}', space=vmem, size = 0x1000, scoped, tag = 'output window, operand 1, single buffered']
    #allocation11 [shape = 's32[1]{0}', space=sflag, size = 0x4, scoped, tag = 'scoped memory for tpu_custom_call.1']
    %12 = vsyncpa [#allocation4], 0
    %13 = vsyncpa [#allocation7], 0
    %14 = vsyncpa [#allocation5], 0
    %15 = vsyncpa [#allocation11], 0
    // Predicated region
    $region2: #{tpu_custom_call.1} parent=1 // pred_check
      _
    $region3: #{tpu_custom_call.1} parent=1 // pred_check_branch
      %17 = sbr.rel (0) target = $region5
    $region4: #{tpu_custom_call.1} parent=1 // pred_region
      %s19 = ssub.s32 2048, 512
      %20 = vsyncadd [#allocation4], %s19
      %s21 = sshll.u32 [#allocation3], 4
      %s22 = int_to_ptr.vmem [resolvable:$true] %s21
      %27 = dma.hbm_to_vmem [thread:$0]  %s0, 512, %s22, [#allocation4], 256, 256, 16
    $region5: #{tpu_custom_call.1} parent=1 // pred_fallthru
      _
    // Predicated region
    $region6: #{tpu_custom_call.1} parent=1 // pred_check
      _
    $region7: #{tpu_custom_call.1} parent=1 // pred_check_branch
      %29 = sbr.rel (0) target = $region9
    $region8: #{tpu_custom_call.1} parent=1 // pred_region
      %s31 = ssub.s32 64, 64
      %32 = vsyncadd [#allocation7], %s31
      %s34 = sshll.u32 [#allocation6], 4
      %s35 = int_to_ptr.vmem [resolvable:$true] %s34
      %37 = dma.hbm_to_vmem [thread:$0]  %s1, 64, %s35, [#allocation7]
    $region9: #{tpu_custom_call.1} parent=1 // pred_fallthru
      _
    // Predicated region
    $region10: #{tpu_custom_call.1} parent=1 // pred_check
      _
    $region11: #{tpu_custom_call.1} parent=1 // pred_check_branch
      %39 = sbr.rel (0) target = $region13
    $region12: #{tpu_custom_call.1} parent=1 // pred_region
      _
    $region13: #{tpu_custom_call.1} parent=1 // pred_fallthru
      _
    // Predicated region
    $region14: #{tpu_custom_call.1} parent=1 // pred_check
      _
    $region15: #{tpu_custom_call.1} parent=1 // pred_check_branch
      %41 = sbr.rel (0) target = $region17
    $region16: #{tpu_custom_call.1} parent=1 // pred_region
      %s43 = ssub.s32 1024, 1024
      %44 = vsyncadd [#allocation7], %s43
      %s45 = sshll.u32 [#allocation8], 4
      %s46 = int_to_ptr.vmem [resolvable:$true] %s45
      %51 = dma.hbm_to_vmem [thread:$0]  %s3, 1024, %s46, [#allocation7], 64, 64, 4
    $region17: #{tpu_custom_call.1} parent=1 // pred_fallthru
      _
    // Predicated region
    $region18: #{tpu_custom_call.1} parent=1 // pred_check
      _
    $region19: #{tpu_custom_call.1} parent=1 // pred_check_branch
      %53 = sbr.rel (0) target = $region21
    $region20: #{tpu_custom_call.1} parent=1 // pred_region
      _
    $region21: #{tpu_custom_call.1} parent=1 // pred_fallthru
      _
    // Predicated region
    $region22: #{tpu_custom_call.1} parent=1 // pred_check
      _
    $region23: #{tpu_custom_call.1} parent=1 // pred_check_branch
      %55 = sbr.rel (0) target = $region25
    $region24: #{tpu_custom_call.1} parent=1 // pred_region
      %56 = dma.done [#allocation4], 2048
    $region25: #{tpu_custom_call.1} parent=1 // pred_fallthru
      _
    // Predicated region
    $region26: #{tpu_custom_call.1} parent=1 // pred_check
      _
    $region27: #{tpu_custom_call.1} parent=1 // pred_check_branch
      %58 = sbr.rel (0) target = $region29
    $region28: #{tpu_custom_call.1} parent=1 // pred_region
      %59 = dma.done [#allocation7], 64
    $region29: #{tpu_custom_call.1} parent=1 // pred_fallthru
      _
    // Predicated region
    $region30: #{tpu_custom_call.1} parent=1 // pred_check
      _
    $region31: #{tpu_custom_call.1} parent=1 // pred_check_branch
      %61 = sbr.rel (0) target = $region33
    $region32: #{tpu_custom_call.1} parent=1 // pred_region
      %62 = dma.done [#allocation7], 1024
    $region33: #{tpu_custom_call.1} parent=1 // pred_fallthru
      _
    %p64 = scmp.eq.s32.totalorder 0, 0
    // Predicated region
    $region34: #{tpu_custom_call.1} parent=1 // pred_check
      %p65 = pneg %p64
    $region35: #{tpu_custom_call.1} parent=1 // pred_check_branch
      %67 = sbr.rel (%p65) target = $region37
    $region36: #{tpu_custom_call.1} parent=1 // pred_region
      %vm68 = vcmask 64512
      %69 = vst.msk [vmem:[#allocation2] sm:$0xff] %vm68, 0.0
    $region37: #{tpu_custom_call.1} parent=1 // pred_fallthru
      _
    %v70 = vld [vmem:[#allocation3] sm:$0xff]
    %v71 = vld [vmem:[#allocation3 + $0x8] sm:$0xff]
    %v72 = vld [vmem:[#allocation3 + $0x10] sm:$0xff]
    %v73 = vld [vmem:[#allocation3 + $0x18] sm:$0xff]
    %v74 = vld [vmem:[#allocation3 + $0x20] sm:$0xff]
    %v75 = vld [vmem:[#allocation3 + $0x28] sm:$0xff]
    %v76 = vld [vmem:[#allocation3 + $0x30] sm:$0xff]
    %v77 = vld [vmem:[#allocation3 + $0x38] sm:$0xff]
    %v78 = vld [vmem:[#allocation3 + $0x40] sm:$0xff]
    %v79 = vld [vmem:[#allocation3 + $0x48] sm:$0xff]
    %v80 = vld [vmem:[#allocation3 + $0x50] sm:$0xff]
    %v81 = vld [vmem:[#allocation3 + $0x58] sm:$0xff]
    %v82 = vld [vmem:[#allocation3 + $0x60] sm:$0xff]
    %v83 = vld [vmem:[#allocation3 + $0x68] sm:$0xff]
    %v84 = vld [vmem:[#allocation3 + $0x70] sm:$0xff]
    %v85 = vld [vmem:[#allocation3 + $0x78] sm:$0xff]
    %v86 = vld [vmem:[#allocation2] sm:$0xff]
    %v87 = vadd.f32 %v70, %v71
    %88 = vadd.xlane.f32.xlu0 %v87
    %v89 = vpop.xlane.xlu0 %88
    %v90 = vadd.f32 %v72, %v73
    %91 = vadd.xlane.f32.xlu0 %v90
    %v92 = vpop.xlane.xlu0 %91
    %v93 = vadd.f32 %v74, %v75
    %94 = vadd.xlane.f32.xlu0 %v93
    %v95 = vpop.xlane.xlu0 %94
    %v96 = vadd.f32 %v76, %v77
    %97 = vadd.xlane.f32.xlu0 %v96
    %v98 = vpop.xlane.xlu0 %97
    %v99 = vadd.f32 %v78, %v79
    %100 = vadd.xlane.f32.xlu0 %v99
    %v101 = vpop.xlane.xlu0 %100
    %v102 = vadd.f32 %v80, %v81
    %103 = vadd.xlane.f32.xlu0 %v102
    %v104 = vpop.xlane.xlu0 %103
    %v105 = vadd.f32 %v82, %v83
    %106 = vadd.xlane.f32.xlu0 %v105
    %v107 = vpop.xlane.xlu0 %106
    %v108 = vadd.f32 %v84, %v85
    %109 = vadd.xlane.f32.xlu0 %v108
    %v110 = vpop.xlane.xlu0 %109
    %v119 = vlaneseq
    %v120 = vand.u32 %v119, 127
    %v121 = vlaneseq
    %v122 = vshrl.u32 %v121, 7
    %v123 = vsub.s32 %v120, %v122
    %v124 = vrot.slane %v89, %v123
    %v125 = vlaneseq
    %v126 = vshrl.u32 %v125, 7
    %v127 = vsub.s32 %v120, %v126
    %v128 = vrot.slane %v92, %v127
    %v129 = vlaneseq
    %v130 = vshrl.u32 %v129, 7
    %v131 = vsub.s32 %v120, %v130
    %v132 = vrot.slane %v95, %v131
    %v133 = vlaneseq
    %v134 = vshrl.u32 %v133, 7
    %v135 = vsub.s32 %v120, %v134
    %v136 = vrot.slane %v98, %v135
    %v137 = vlaneseq
    %v138 = vshrl.u32 %v137, 7
    %v139 = vsub.s32 %v120, %v138
    %v140 = vrot.slane %v101, %v139
    %v141 = vlaneseq
    %v142 = vshrl.u32 %v141, 7
    %v143 = vsub.s32 %v120, %v142
    %v144 = vrot.slane %v104, %v143
    %v145 = vlaneseq
    %v146 = vshrl.u32 %v145, 7
    %v147 = vsub.s32 %v120, %v146
    %v148 = vrot.slane %v107, %v147
    %v149 = vlaneseq
    %v150 = vshrl.u32 %v149, 7
    %v151 = vsub.s32 %v120, %v150
    %v152 = vrot.slane %v110, %v151
    %vm153 = vcmask 1041409
    %v154 = vsel %vm153, %v128, %v124
    %vm155 = vcmask 1042434
    %v156 = vsel %vm155, %v132, %v154
    %vm157 = vcmask 1043459
    %v158 = vsel %vm157, %v136, %v156
    %vm159 = vcmask 1044484
    %v160 = vsel %vm159, %v140, %v158
    %vm161 = vcmask 1045509
    %v162 = vsel %vm161, %v144, %v160
    %vm163 = vcmask 1046534
    %v164 = vsel %vm163, %v148, %v162
    %vm165 = vcmask 1047559
    %v166 = vsel %vm165, %v152, %v164
    %v168 = vadd.f32 %v86, %v166
    %vm169 = vcmask 64512
    %170 = vst.msk [vmem:[#allocation2] sm:$0xff] %vm169, %v168
    // Predicated region
    $region38: #{tpu_custom_call.1} parent=1 // pred_check
      %p171 = pneg %p64
    $region39: #{tpu_custom_call.1} parent=1 // pred_check_branch
      %173 = sbr.rel (%p171) target = $region41
    $region40: #{tpu_custom_call.1} parent=1 // pred_region
      %v174 = vld [vmem:[#allocation2] sm:$0xff]
      %v175 = vmul.f32 %v174, 0.00390625
      %v176 = vpack.c.bf16 %v175, %v175
      %v177 = vld [vmem:[#allocation6] sm:$0xf]
      %v178 = vld [vmem:[%s2] sm:$0x1]
      %v180 = vlaneseq
      %v181 = vshrl.u32 %v180, 7
      %v182 = vsub.s32 0, %v181
      %v183 = vrot.slane %v178, %v182
      %v186 = vsel %vm169, %v176, 0
      %vm188 = vcmask 1043456
      %v190 = vsel %vm188, %v177, 0
      %192 = vmatprep.subr.bf16.mxu0 0
      %193 = vmatpush1.bf16.msra.mxu0 %v190
      %194 = vmatprep.subr.bf16.mxu0 0
      %195 = vmatpush1.bf16.msra.mxu0 0
      %196 = vmatprep.subr.bf16.mxu0 0
      %197 = vmatpush1.bf16.msra.mxu0 0
      %198 = vmatprep.subr.bf16.mxu0 0
      %199 = vmatpush1.bf16.msra.mxu0 0
      %200 = vmatprep.subr.bf16.mxu0 0
      %201 = vmatpush1.bf16.msra.mxu0 0
      %202 = vmatprep.subr.bf16.mxu0 0
      %203 = vmatpush1.bf16.msra.mxu0 0
      %204 = vmatprep.subr.bf16.mxu0 0
      %205 = vmatpush1.bf16.msra.mxu0 0
      %206 = vmatprep.subr.bf16.mxu0 0
      %207 = vmatpush1.bf16.msra.mxu0 0
      %208 = vmatprep.subr.bf16.mxu0 0
      %209 = vmatpush1.bf16.msra.mxu0 0
      %210 = vmatprep.subr.bf16.mxu0 0
      %211 = vmatpush1.bf16.msra.mxu0 0
      %212 = vmatprep.subr.bf16.mxu0 0
      %213 = vmatpush1.bf16.msra.mxu0 0
      %214 = vmatprep.subr.bf16.mxu0 0
      %215 = vmatpush1.bf16.msra.mxu0 0
      %216 = vmatprep.subr.bf16.mxu0 0
      %217 = vmatpush1.bf16.msra.mxu0 0
      %218 = vmatprep.subr.bf16.mxu0 0
      %219 = vmatpush1.bf16.msra.mxu0 0
      %220 = vmatprep.subr.bf16.mxu0 0
      %221 = vmatpush1.bf16.msra.mxu0 0
      %222 = vmatprep.subr.bf16.mxu0 0
      %223 = vmatpush1.bf16.msra.mxu0 0
      %224 = vmatprep.mubr.bf16.mxu0 0
      %225 = vmatmul.mubr.bf16.gmra.mrb[0].mxu0 %v186
      %v226 = vpop.f32.mrb[0].mxu0
      %v227 = vadd.f32 %v183, %v226
      %v228 = vpop.f32.mrb[0].mxu0
      %v229 = vpop.f32.mrb[0].mxu0
      %v230 = vpop.f32.mrb[0].mxu0
      %231 = vdwg.mxu0
      %v232 = vmax.f32 %v227, 0.0
      %233 = vst [vmem:[#allocation9] sm:$0xff] %v232
      %v234 = vpack.c.bf16 %v232, %v232
      %v235 = vld [vmem:[#allocation8] sm:$0xf]
      %v236 = vld [vmem:[#allocation8 + $0x4] sm:$0xf]
      %v237 = vld [vmem:[#allocation8 + $0x8] sm:$0xf]
      %v238 = vld [vmem:[#allocation8 + $0xc] sm:$0xf]
      %v239 = vld [vmem:[#allocation8 + $0x10] sm:$0xf]
      %v240 = vld [vmem:[#allocation8 + $0x14] sm:$0xf]
      %v241 = vld [vmem:[#allocation8 + $0x18] sm:$0xf]
      %v242 = vld [vmem:[#allocation8 + $0x1c] sm:$0xf]
      %v243 = vld [vmem:[#allocation8 + $0x20] sm:$0xf]
      %v244 = vld [vmem:[#allocation8 + $0x24] sm:$0xf]
      %v245 = vld [vmem:[#allocation8 + $0x28] sm:$0xf]
      %v246 = vld [vmem:[#allocation8 + $0x2c] sm:$0xf]
      %v247 = vld [vmem:[#allocation8 + $0x30] sm:$0xf]
      %v248 = vld [vmem:[#allocation8 + $0x34] sm:$0xf]
      %v249 = vld [vmem:[#allocation8 + $0x38] sm:$0xf]
      %v250 = vld [vmem:[#allocation8 + $0x3c] sm:$0xf]
      %v251 = vld [vmem:[%s4] sm:$0x1]
      %v253 = vlaneseq
      %v254 = vshrl.u32 %v253, 7
      %v255 = vsub.s32 0, %v254
      %v256 = vrot.slane %v251, %v255
      %v274 = vunpack.c.l.b16 %v235
      %v275 = vunpack.c.l.b16 %v236
      %v276 = vunpack.c.l.b16 %v237
      %v277 = vunpack.c.l.b16 %v238
      %v278 = vunpack.c.l.b16 %v239
      %v279 = vunpack.c.l.b16 %v240
      %v280 = vunpack.c.l.b16 %v241
      %v281 = vunpack.c.l.b16 %v242
      %v282 = vunpack.c.l.b16 %v243
      %v283 = vunpack.c.l.b16 %v244
      %v284 = vunpack.c.l.b16 %v245
      %v285 = vunpack.c.l.b16 %v246
      %v286 = vunpack.c.l.b16 %v247
      %v287 = vunpack.c.l.b16 %v248
      %v288 = vunpack.c.l.b16 %v249
      %v289 = vunpack.c.l.b16 %v250
      %v290 = vpack.c.b16 %v275, %v274
      %v291 = vpack.c.b16 %v277, %v276
      %v292 = vpack.c.b16 %v279, %v278
      %v293 = vpack.c.b16 %v281, %v280
      %v294 = vpack.c.b16 %v283, %v282
      %v295 = vpack.c.b16 %v285, %v284
      %v296 = vpack.c.b16 %v287, %v286
      %v297 = vpack.c.b16 %v289, %v288
      %306 = vmatprep.subr.bf16.mxu0 0
      %307 = vmatpush1.bf16.msra.mxu0 %v290
      %308 = vmatprep.subr.bf16.mxu0 0
      %309 = vmatpush1.bf16.msra.mxu0 %v291
      %310 = vmatprep.subr.bf16.mxu0 0
      %311 = vmatpush1.bf16.msra.mxu0 %v292
      %312 = vmatprep.subr.bf16.mxu0 0
      %313 = vmatpush1.bf16.msra.mxu0 %v293
      %314 = vmatprep.subr.bf16.mxu0 0
      %315 = vmatpush1.bf16.msra.mxu0 %v294
      %316 = vmatprep.subr.bf16.mxu0 0
      %317 = vmatpush1.bf16.msra.mxu0 %v295
      %318 = vmatprep.subr.bf16.mxu0 0
      %319 = vmatpush1.bf16.msra.mxu0 %v296
      %320 = vmatprep.subr.bf16.mxu0 0
      %321 = vmatpush1.bf16.msra.mxu0 %v297
      %322 = vmatprep.subr.bf16.mxu0 0
      %323 = vmatpush1.bf16.msra.mxu0 0
      %324 = vmatprep.subr.bf16.mxu0 0
      %325 = vmatpush1.bf16.msra.mxu0 0
      %326 = vmatprep.subr.bf16.mxu0 0
      %327 = vmatpush1.bf16.msra.mxu0 0
      %328 = vmatprep.subr.bf16.mxu0 0
      %329 = vmatpush1.bf16.msra.mxu0 0
      %330 = vmatprep.subr.bf16.mxu0 0
      %331 = vmatpush1.bf16.msra.mxu0 0
      %332 = vmatprep.subr.bf16.mxu0 0
      %333 = vmatpush1.bf16.msra.mxu0 0
      %334 = vmatprep.subr.bf16.mxu0 0
      %335 = vmatpush1.bf16.msra.mxu0 0
      %336 = vmatprep.subr.bf16.mxu0 0
      %337 = vmatpush1.bf16.msra.mxu0 0
      %338 = vmatprep.mubr.bf16.mxu0 0
      %339 = vmatmul.mubr.bf16.gmra.mrb[0].mxu0 %v234
      %v340 = vpop.f32.mrb[0].mxu0
      %v341 = vadd.f32 %v256, %v340
      %v342 = vpop.f32.mrb[0].mxu0
      %v343 = vpop.f32.mrb[0].mxu0
      %v344 = vpop.f32.mrb[0].mxu0
      %345 = vdwg.mxu0
      %346 = vst [vmem:[#allocation10] sm:$0xff] %v341
    $region41: #{tpu_custom_call.1} parent=1 // pred_fallthru
      _
    // Predicated region
    $region42: #{tpu_custom_call.1} parent=1 // pred_check
      _
    $region43: #{tpu_custom_call.1} parent=1 // pred_check_branch
      %348 = sbr.rel (0) target = $region45
    $region44: #{tpu_custom_call.1} parent=1 // pred_region
      %s350 = ssub.s32 128, 128
      %351 = vsyncadd [#allocation5], %s350
      %s353 = sshll.u32 [#allocation9], 4
      %s354 = int_to_ptr.vmem [resolvable:$true] %s353
      %356 = dma.vmem_to_hbm [thread:$0]  %s354, 128, %s5, [#allocation5]
    $region45: #{tpu_custom_call.1} parent=1 // pred_fallthru
      _
    // Predicated region
    $region46: #{tpu_custom_call.1} parent=1 // pred_check
      _
    $region47: #{tpu_custom_call.1} parent=1 // pred_check_branch
      %358 = sbr.rel (0) target = $region49
    $region48: #{tpu_custom_call.1} parent=1 // pred_region
      %s360 = ssub.s32 128, 128
      %361 = vsyncadd [#allocation11], %s360
      %s363 = sshll.u32 [#allocation10], 4
      %s364 = int_to_ptr.vmem [resolvable:$true] %s363
      %366 = dma.vmem_to_hbm [thread:$0]  %s364, 128, %s6, [#allocation11]
    $region49: #{tpu_custom_call.1} parent=1 // pred_fallthru
      _
    // Predicated region
    $region50: #{tpu_custom_call.1} parent=1 // pred_check
      _
    $region51: #{tpu_custom_call.1} parent=1 // pred_check_branch
      %368 = sbr.rel (0) target = $region53
    $region52: #{tpu_custom_call.1} parent=1 // pred_region
      %369 = dma.done [#allocation5], 128
    $region53: #{tpu_custom_call.1} parent=1 // pred_fallthru
      _
    // Predicated region
    $region54: #{tpu_custom_call.1} parent=1 // pred_check
      _
    $region55: #{tpu_custom_call.1} parent=1 // pred_check_branch
      %371 = sbr.rel (0) target = $region57
    $region56: #{tpu_custom_call.1} parent=1 // pred_region
      %372 = dma.done [#allocation11], 128
    $region57: #{tpu_custom_call.1} parent=1 // pred_fallthru
      _
    %373 = vsyncpa [#allocation4], 1
    %374 = vsyncpa [#allocation7], 1
    %375 = vsyncpa [#allocation5], 1
    %376 = vsyncpa [#allocation11], 1

</llo_original>
